<compile_context>
chip_gen: v7x
topology: tpu7x:2x2x1
jax: 0.10.0
libtpu: 0.0.40
codegen_flags: <defaults>
</compile_context>

<pallas_src>
import functools

import jax
import jax.numpy as jnp
from jax.experimental import pallas as pl
from jax.experimental.pallas import tpu as pltpu


_TILE_B = 512        # row tile for the large-batch path (lane-sparse scalar cap)
_NUM_CORES = 2       # v7x megacore split; harmless (serial) on v5e/v6e


# ----------------------------- shared math -----------------------------------
def _hinge_rows(c, g, im, *, margin, eps):
    """Per-row sum of hinge(margin - cos_sim) over the three modality pairs."""
    inv_eps = 1.0 / eps

    def inv_norm(a):
        # 1 / max(||a||, eps)  ==  min(rsqrt(||a||^2), 1/eps)   (EUP rsqrt)
        ss = jnp.sum(a * a, axis=1, keepdims=True)              # (rows, 1)
        return jnp.minimum(jax.lax.rsqrt(ss), inv_eps)

    n_c, n_g, n_i = inv_norm(c), inv_norm(g), inv_norm(im)

    def hinge(a, b, ia, ib):
        sim = jnp.sum(a * b, axis=1, keepdims=True) * ia * ib   # (rows, 1)
        return jnp.maximum(margin - sim, 0.0)

    return (hinge(c, g, n_c, n_g)
            + hinge(c, im, n_c, n_i)
            + hinge(g, im, n_g, n_i))                            # (rows, 1)


# ----------------------------- Pallas kernels --------------------------------
def _loss_kernel_small(c_ref, g_ref, i_ref, out_ref, *, margin, eps, batch):
    """Whole batch in one block: no padding, no masking, no accumulator."""
    c = c_ref[...].astype(jnp.float32)
    g = g_ref[...].astype(jnp.float32)
    im = i_ref[...].astype(jnp.float32)
    h = _hinge_rows(c, g, im, margin=margin, eps=eps)            # (B, 1)
    out_ref[...] = jnp.sum(h, axis=0, keepdims=True) * (1.0 / batch)


def _loss_kernel_tiled(c_ref, g_ref, i_ref, out_ref, *, margin, eps, batch,
                       tile_b):
    """Batch tiled over (core, step); per-core resident (1,1,1) accumulator."""
    step = pl.program_id(1)

    @pl.when(step == 0)
    def _():
        out_ref[...] = jnp.zeros_like(out_ref)

    c = c_ref[...].astype(jnp.float32)
    g = g_ref[...].astype(jnp.float32)
    im = i_ref[...].astype(jnp.float32)
    h = _hinge_rows(c, g, im, margin=margin, eps=eps)            # (tile_b, 1)

    # Global row ids for this (unclamped) tile.  The index_map clamps the block
    # index so the DMA never reads past the array; validity is decided here.
    # Rows >= batch (partial last block garbage / duplicated over-run tiles)
    # contribute 0 via a select (safe even if the garbage is NaN/Inf).
    tile_idx = pl.program_id(0) * pl.num_programs(1) + step
    row = tile_idx * tile_b + jax.lax.broadcasted_iota(jnp.int32, h.shape, 0)
    h = jnp.where(row < batch, h, 0.0)

    s = jnp.sum(h, axis=0, keepdims=True)                        # (1, 1)
    out_ref[...] += s[None]                                      # (1, 1, 1)


# --------------------------------- wrapper ------------------------------------
@functools.partial(jax.jit, static_argnames=("margin", "eps"))
def contrastive_loss(clinical, gene, image, *, margin=0.1, eps=1e-8):
    """Fused Pallas ContrastiveLoss over three (B, D) feature arrays."""
    assert clinical.shape == gene.shape == image.shape
    B, D = clinical.shape

    # Cap each input block at ~512 KiB (rows multiple of 8), at most 512 rows.
    tile_b = min(_TILE_B, max(8, (((512 * 1024) // (4 * D)) // 8) * 8))

    if B <= tile_b:
        # ---------- single-block fast path (typical B) ----------
        kernel = functools.partial(_loss_kernel_small, margin=float(margin),
                                   eps=float(eps), batch=B)
        out = pl.pallas_call(
            kernel,
            out_shape=jax.ShapeDtypeStruct((1, 1), jnp.float32),
            grid=(1,),
            in_specs=[pl.BlockSpec((B, D), lambda i: (0, 0))] * 3,
            out_specs=pl.BlockSpec((1, 1), lambda i: (0, 0)),
            compiler_params=pltpu.CompilerParams(
                dimension_semantics=("arbitrary",)),
        )(clinical, gene, image)
        return out[0, 0]

    # ---------- tiled large-batch path: partial blocks, no jnp.pad ----------
    n_tiles = pl.cdiv(B, tile_b)
    per_core = pl.cdiv(n_tiles, _NUM_CORES)

    def tile_map(core, i):
        # Clamp so the DMA never addresses past the array; over-run tiles are
        # fully masked inside the kernel via their (unclamped) row ids.
        return (jnp.minimum(core * per_core + i, n_tiles - 1), 0)

    feat_spec = pl.BlockSpec((tile_b, D), tile_map)
    kernel = functools.partial(_loss_kernel_tiled, margin=float(margin),
                               eps=float(eps), batch=B, tile_b=tile_b)

    partial_sums = pl.pallas_call(
        kernel,
        out_shape=jax.ShapeDtypeStruct((_NUM_CORES, 1, 1), jnp.float32),
        grid=(_NUM_CORES, per_core),
        in_specs=[feat_spec] * 3,
        # Output block constant along the inner ("arbitrary") reduction axis,
        # one resident accumulator per core along the leading "parallel" axis.
        out_specs=pl.BlockSpec((1, 1, 1), lambda core, i: (core, 0, 0)),
        compiler_params=pltpu.CompilerParams(
            dimension_semantics=("parallel", "arbitrary")),
    )(clinical, gene, image)

    return jnp.sum(partial_sums) * (1.0 / B)


# --------------------------- pure-JAX reference -------------------------------
def _reference_loss(c, g, im, margin=0.1, eps=1e-8):
    def cos(a, b):
        na = jnp.maximum(jnp.sqrt(jnp.sum(a * a, 1)), eps)
        nb = jnp.maximum(jnp.sqrt(jnp.sum(b * b, 1)), eps)
        return jnp.sum(a * b, 1) / (na * nb)

    def hinge_mean(s):
        return jnp.mean(jnp.maximum(margin - s, 0.0))

    return hinge_mean(cos(c, g)) + hinge_mean(cos(c, im)) + hinge_mean(cos(g, im))


# ----------------------------------- main -------------------------------------
if __name__ == "__main__":
    key = jax.random.PRNGKey(0)
    kc, kg, ki, kc2, kg2, ki2, kc3, kg3, ki3 = jax.random.split(key, 9)

    # Shapes implied by the surrounding model: three (B, 64) modality features.
    B, D = 2, 64
    clinical = jax.random.normal(kc, (B, D), jnp.float32)
    gene = jax.random.normal(kg, (B, D), jnp.float32)
    image = jax.random.normal(ki, (B, D), jnp.float32)

    loss = contrastive_loss(clinical, gene, image, margin=0.1)
    jax.block_until_ready(loss)
    assert loss.shape == ()
    assert jnp.allclose(loss, _reference_loss(clinical, gene, image),
                        rtol=1e-4, atol=1e-6)

    # Mid-size ragged batch: still the single-block fast path, no padding.
    B2 = 37
    c2 = jax.random.normal(kc2, (B2, D), jnp.float32)
    g2 = jax.random.normal(kg2, (B2, D), jnp.float32)
    i2 = jax.random.normal(ki2, (B2, D), jnp.float32)
    loss2 = contrastive_loss(c2, g2, i2, margin=0.1)
    jax.block_until_ready(loss2)
    assert jnp.allclose(loss2, _reference_loss(c2, g2, i2),
                        rtol=1e-4, atol=1e-6)

    # Large ragged batch: exercises the tiled path (partial last block,
    # two-core split with a clamped/masked over-run tile).
    B3 = 1203
    c3 = jax.random.normal(kc3, (B3, D), jnp.float32)
    g3 = jax.random.normal(kg3, (B3, D), jnp.float32)
    i3 = jax.random.normal(ki3, (B3, D), jnp.float32)
    loss3 = contrastive_loss(c3, g3, i3, margin=0.1)
    jax.block_until_ready(loss3)
    assert jnp.allclose(loss3, _reference_loss(c3, g3, i3),
                        rtol=1e-4, atol=1e-6)

    print("KERNEL_OK")
</pallas_src>

<mosaic_0001>
module attributes {stable_mosaic.version = 11 : i64} {
  func.func @_loss_kernel_small(%arg0: i32, %arg1: memref<2x64xf32, #tpu.memory_space<vmem>>, %arg2: memref<2x64xf32, #tpu.memory_space<vmem>>, %arg3: memref<2x64xf32, #tpu.memory_space<vmem>>, %arg4: memref<1x1xf32, #tpu.memory_space<vmem>>) attributes {dimension_semantics = [#tpu.dimension_semantics<arbitrary>], iteration_bounds = array<i64: 1>, scalar_prefetch = 0 : i64, scratch_operands = 0 : i64, tpu.core_type = #tpu.core_type<tc>, window_params = [{pipeline_mode = #tpu.pipeline_mode<synchronous>, transform_indices = @transform_0, window_bounds = array<i64: 2, 64>}, {pipeline_mode = #tpu.pipeline_mode<synchronous>, transform_indices = @transform_1, window_bounds = array<i64: 2, 64>}, {pipeline_mode = #tpu.pipeline_mode<synchronous>, transform_indices = @transform_2, window_bounds = array<i64: 2, 64>}, {pipeline_mode = #tpu.pipeline_mode<synchronous>, transform_indices = @transform_3, window_bounds = array<i64: 1, 1>}]} {
    %c0 = arith.constant 0 : index
    %c0_0 = arith.constant 0 : index
    %0 = vector.load %arg1[%c0, %c0_0] : memref<2x64xf32, #tpu.memory_space<vmem>>, vector<2x64xf32>
    %c0_1 = arith.constant 0 : index
    %c0_2 = arith.constant 0 : index
    %1 = vector.load %arg2[%c0_1, %c0_2] : memref<2x64xf32, #tpu.memory_space<vmem>>, vector<2x64xf32>
    %c0_3 = arith.constant 0 : index
    %c0_4 = arith.constant 0 : index
    %2 = vector.load %arg3[%c0_3, %c0_4] : memref<2x64xf32, #tpu.memory_space<vmem>>, vector<2x64xf32>
    %3 = arith.mulf %0, %0 : vector<2x64xf32>
    %cst = arith.constant dense<0.000000e+00> : vector<2xf32>
    %4 = vector.multi_reduction <add>, %3, %cst [1] : vector<2x64xf32> to vector<2xf32>
    %5 = vector.shape_cast %4 : vector<2xf32> to vector<2x1xf32>
    %6 = math.rsqrt %5 : vector<2x1xf32>
    %cst_5 = arith.constant 1.000000e+08 : f32
    %7 = vector.broadcast %cst_5 : f32 to vector<2x1xf32>
    %8 = arith.minimumf %6, %7 : vector<2x1xf32>
    %9 = arith.mulf %1, %1 : vector<2x64xf32>
    %cst_6 = arith.constant dense<0.000000e+00> : vector<2xf32>
    %10 = vector.multi_reduction <add>, %9, %cst_6 [1] : vector<2x64xf32> to vector<2xf32>
    %11 = vector.shape_cast %10 : vector<2xf32> to vector<2x1xf32>
    %12 = math.rsqrt %11 : vector<2x1xf32>
    %cst_7 = arith.constant 1.000000e+08 : f32
    %13 = vector.broadcast %cst_7 : f32 to vector<2x1xf32>
    %14 = arith.minimumf %12, %13 : vector<2x1xf32>
    %15 = arith.mulf %2, %2 : vector<2x64xf32>
    %cst_8 = arith.constant dense<0.000000e+00> : vector<2xf32>
    %16 = vector.multi_reduction <add>, %15, %cst_8 [1] : vector<2x64xf32> to vector<2xf32>
    %17 = vector.shape_cast %16 : vector<2xf32> to vector<2x1xf32>
    %18 = math.rsqrt %17 : vector<2x1xf32>
    %cst_9 = arith.constant 1.000000e+08 : f32
    %19 = vector.broadcast %cst_9 : f32 to vector<2x1xf32>
    %20 = arith.minimumf %18, %19 : vector<2x1xf32>
    %21 = arith.mulf %0, %1 : vector<2x64xf32>
    %cst_10 = arith.constant dense<0.000000e+00> : vector<2xf32>
    %22 = vector.multi_reduction <add>, %21, %cst_10 [1] : vector<2x64xf32> to vector<2xf32>
    %23 = vector.shape_cast %22 : vector<2xf32> to vector<2x1xf32>
    %24 = arith.mulf %23, %8 : vector<2x1xf32>
    %25 = arith.mulf %24, %14 : vector<2x1xf32>
    %cst_11 = arith.constant 1.000000e-01 : f32
    %26 = vector.broadcast %cst_11 : f32 to vector<2x1xf32>
    %27 = arith.subf %26, %25 : vector<2x1xf32>
    %cst_12 = arith.constant 0.000000e+00 : f32
    %28 = vector.broadcast %cst_12 : f32 to vector<2x1xf32>
    %29 = arith.maximumf %27, %28 : vector<2x1xf32>
    %30 = arith.mulf %0, %2 : vector<2x64xf32>
    %cst_13 = arith.constant dense<0.000000e+00> : vector<2xf32>
    %31 = vector.multi_reduction <add>, %30, %cst_13 [1] : vector<2x64xf32> to vector<2xf32>
    %32 = vector.shape_cast %31 : vector<2xf32> to vector<2x1xf32>
    %33 = arith.mulf %32, %8 : vector<2x1xf32>
    %34 = arith.mulf %33, %20 : vector<2x1xf32>
    %cst_14 = arith.constant 1.000000e-01 : f32
    %35 = vector.broadcast %cst_14 : f32 to vector<2x1xf32>
    %36 = arith.subf %35, %34 : vector<2x1xf32>
    %cst_15 = arith.constant 0.000000e+00 : f32
    %37 = vector.broadcast %cst_15 : f32 to vector<2x1xf32>
    %38 = arith.maximumf %36, %37 : vector<2x1xf32>
    %39 = arith.addf %29, %38 : vector<2x1xf32>
    %40 = arith.mulf %1, %2 : vector<2x64xf32>
    %cst_16 = arith.constant dense<0.000000e+00> : vector<2xf32>
    %41 = vector.multi_reduction <add>, %40, %cst_16 [1] : vector<2x64xf32> to vector<2xf32>
    %42 = vector.shape_cast %41 : vector<2xf32> to vector<2x1xf32>
    %43 = arith.mulf %42, %14 : vector<2x1xf32>
    %44 = arith.mulf %43, %20 : vector<2x1xf32>
    %cst_17 = arith.constant 1.000000e-01 : f32
    %45 = vector.broadcast %cst_17 : f32 to vector<2x1xf32>
    %46 = arith.subf %45, %44 : vector<2x1xf32>
    %cst_18 = arith.constant 0.000000e+00 : f32
    %47 = vector.broadcast %cst_18 : f32 to vector<2x1xf32>
    %48 = arith.maximumf %46, %47 : vector<2x1xf32>
    %49 = arith.addf %39, %48 : vector<2x1xf32>
    %cst_19 = arith.constant dense<0.000000e+00> : vector<1xf32>
    %50 = vector.multi_reduction <add>, %49, %cst_19 [0] : vector<2x1xf32> to vector<1xf32>
    %51 = vector.shape_cast %50 : vector<1xf32> to vector<1x1xf32>
    %cst_20 = arith.constant 5.000000e-01 : f32
    %52 = vector.broadcast %cst_20 : f32 to vector<1x1xf32>
    %53 = arith.mulf %51, %52 : vector<1x1xf32>
    %c0_21 = arith.constant 0 : index
    %c0_22 = arith.constant 0 : index
    %54 = vector.load %arg4[%c0_21, %c0_22] : memref<1x1xf32, #tpu.memory_space<vmem>>, vector<1x1xf32>
    tpu.vector_store %arg4[%c0_21, %c0_22], %53 {strides = array<i32>} : memref<1x1xf32, #tpu.memory_space<vmem>>, vector<1x1xf32>,
    return
  }
  func.func @transform_0(%arg0: i32) -> (i32, i32) {
    %c0_i32 = arith.constant 0 : i32
    %c0_i32_0 = arith.constant 0 : i32
    %c0_i32_1 = arith.constant 0 : i32
    return %c0_i32, %c0_i32_0 : i32, i32
  }
  func.func @transform_1(%arg0: i32) -> (i32, i32) {
    %c0_i32 = arith.constant 0 : i32
    %c0_i32_0 = arith.constant 0 : i32
    %c0_i32_1 = arith.constant 0 : i32
    return %c0_i32, %c0_i32_0 : i32, i32
  }
  func.func @transform_2(%arg0: i32) -> (i32, i32) {
    %c0_i32 = arith.constant 0 : i32
    %c0_i32_0 = arith.constant 0 : i32
    %c0_i32_1 = arith.constant 0 : i32
    return %c0_i32, %c0_i32_0 : i32, i32
  }
  func.func @transform_3(%arg0: i32) -> (i32, i32) {
    %c0_i32 = arith.constant 0 : i32
    %c0_i32_0 = arith.constant 0 : i32
    %c0_i32_1 = arith.constant 0 : i32
    return %c0_i32, %c0_i32_0 : i32, i32
  }
}

</mosaic_0001>

<llo_original>
// kernel: contrastive_loss.1
$region0: #{contrastive_loss.1}
  #allocation0 [shape = 'u32[]', space=smem, size = 0x4, offset = 0x4, fixed_abs, tag = 'smem constant byte address 0x4 - core index']
  #allocation1 [shape = 'u32[144,128]{1,0:T(1,128)}', space=vmem, size = 0x12000, scoped, tag = 'internal scratch']
  %s0 = inlined_call_operand.hbm [shape: f32[2,64], index: 0, kind: input, shape index: {}]
  %s1 = inlined_call_operand.vmem [shape: f32[2,64], index: 1, kind: input, shape index: {}]
  %s2 = inlined_call_operand.vmem [shape: f32[2,64], index: 2, kind: input, shape index: {}]
  %s3 = inlined_call_operand.hbm [shape: f32[1,1], index: 3, kind: output, shape index: {}]
  %s4 = sld [smem:[#allocation0]]
  $region26: #{contrastive_loss.1} parent=0
    _
  %s6 = ssub.s32 1, %s4
  %s7 = scalar_select 0, %s6, %s4
  $region1: #{contrastive_loss.1} parent=0
    #allocation2 [shape = 'u8[1024]{0}', space=vmem, size = 0x400, scoped, tag = 'input window, operand 0, single buffered']
    #allocation3 [shape = 's32[1]{0}', space=sflag, size = 0x4, scoped, tag = 'scoped memory for contrastive_loss.1']
    #allocation4 [shape = 's32[1]{0}', space=sflag, size = 0x4, scoped, tag = 'scoped memory for contrastive_loss.1']
    #allocation5 [shape = 'u8[512]{0}', space=vmem, size = 0x400, scoped, tag = 'output window, operand 0, single buffered']
    %8 = vsyncpa [#allocation3], 0
    %9 = vsyncpa [#allocation4], 0
    // Predicated region
    $region2: #{contrastive_loss.1} parent=1 // pred_check
      _
    $region3: #{contrastive_loss.1} parent=1 // pred_check_branch
      %11 = sbr.rel (0) target = $region5
    $region4: #{contrastive_loss.1} parent=1 // pred_region
      %s13 = ssub.s32 32, 32
      %14 = vsyncadd [#allocation3], %s13
      %s16 = sshll.u32 [#allocation2], 4
      %s17 = int_to_ptr.vmem [resolvable:$true] %s16
      %19 = dma.hbm_to_vmem [thread:$0]  %s0, 32, %s17, [#allocation3]
    $region5: #{contrastive_loss.1} parent=1 // pred_fallthru
      _
    // Predicated region
    $region6: #{contrastive_loss.1} parent=1 // pred_check
      _
    $region7: #{contrastive_loss.1} parent=1 // pred_check_branch
      %21 = sbr.rel (0) target = $region9
    $region8: #{contrastive_loss.1} parent=1 // pred_region
      _
    $region9: #{contrastive_loss.1} parent=1 // pred_fallthru
      _
    // Predicated region
    $region10: #{contrastive_loss.1} parent=1 // pred_check
      _
    $region11: #{contrastive_loss.1} parent=1 // pred_check_branch
      %23 = sbr.rel (0) target = $region13
    $region12: #{contrastive_loss.1} parent=1 // pred_region
      _
    $region13: #{contrastive_loss.1} parent=1 // pred_fallthru
      _
    // Predicated region
    $region14: #{contrastive_loss.1} parent=1 // pred_check
      _
    $region15: #{contrastive_loss.1} parent=1 // pred_check_branch
      %25 = sbr.rel (0) target = $region17
    $region16: #{contrastive_loss.1} parent=1 // pred_region
      %26 = dma.done [#allocation3], 32
    $region17: #{contrastive_loss.1} parent=1 // pred_fallthru
      _
    %v27 = vld [vmem:[#allocation2] sm:$0x3]
    %v28 = vld [vmem:[%s1] sm:$0x3]
    %v29 = vld [vmem:[%s2] sm:$0x3]
    %v30 = vmul.f32 %v27, %v27
    %vm31 = vcmask 517120
    %v32 = vsel %vm31, %v30, 0.0
    %33 = vadd.xlane.f32.xlu0 %v32
    %v34 = vpop.xlane.xlu0 %33
    %v35 = vrsqrt.pop %v34
    %v36 = vmin.f32 %v35, 1e+08
    %v37 = vmul.f32 %v28, %v28
    %v38 = vsel %vm31, %v37, 0.0
    %39 = vadd.xlane.f32.xlu0 %v38
    %v40 = vpop.xlane.xlu0 %39
    %v41 = vrsqrt.pop %v40
    %v42 = vmin.f32 %v41, 1e+08
    %v43 = vmul.f32 %v29, %v29
    %v44 = vsel %vm31, %v43, 0.0
    %45 = vadd.xlane.f32.xlu0 %v44
    %v46 = vpop.xlane.xlu0 %45
    %v47 = vrsqrt.pop %v46
    %v48 = vmin.f32 %v47, 1e+08
    %v49 = vmul.f32 %v27, %v28
    %v50 = vsel %vm31, %v49, 0.0
    %51 = vadd.xlane.f32.xlu0 %v50
    %v52 = vpop.xlane.xlu0 %51
    %v53 = vmul.f32 %v52, %v36
    %v54 = vmul.f32 %v53, %v42
    %v55 = vsub.f32 0.1, %v54
    %v56 = vmax.f32 %v55, 0.0
    %v57 = vmul.f32 %v27, %v29
    %v58 = vsel %vm31, %v57, 0.0
    %59 = vadd.xlane.f32.xlu0 %v58
    %v60 = vpop.xlane.xlu0 %59
    %v61 = vmul.f32 %v60, %v36
    %v62 = vmul.f32 %v61, %v48
    %v63 = vsub.f32 0.1, %v62
    %v64 = vmax.f32 %v63, 0.0
    %v65 = vadd.f32 %v56, %v64
    %v66 = vmul.f32 %v28, %v29
    %v67 = vsel %vm31, %v66, 0.0
    %68 = vadd.xlane.f32.xlu0 %v67
    %v69 = vpop.xlane.xlu0 %68
    %v70 = vmul.f32 %v69, %v42
    %v71 = vmul.f32 %v70, %v48
    %v72 = vsub.f32 0.1, %v71
    %v73 = vmax.f32 %v72, 0.0
    %v74 = vadd.f32 %v65, %v73
    %vm75 = vcmask 1041408
    %v76 = vsel %vm75, %v74, 0.0
    %v77 = vrot.slane %v76, 4
    %v78 = vadd.f32 %v76, %v77
    %v79 = vrot.slane %v78, 2
    %v80 = vadd.f32 %v78, %v79
    %v81 = vrot.slane %v80, 1
    %v82 = vadd.f32 %v80, %v81
    %v83 = vmul.f32 %v82, 0.5
    %vm84 = vcmask 0
    %85 = vst.msk [vmem:[#allocation5] sm:$0x1] %vm84, %v83
    // Predicated region
    $region18: #{contrastive_loss.1} parent=1 // pred_check
      _
    $region19: #{contrastive_loss.1} parent=1 // pred_check_branch
      %87 = sbr.rel (0) target = $region21
    $region20: #{contrastive_loss.1} parent=1 // pred_region
      %s89 = ssub.s32 16, 16
      %90 = vsyncadd [#allocation4], %s89
      %s92 = sshll.u32 [#allocation5], 4
      %s93 = int_to_ptr.vmem [resolvable:$true] %s92
      %95 = dma.vmem_to_hbm [thread:$0]  %s93, 16, %s3, [#allocation4]
    $region21: #{contrastive_loss.1} parent=1 // pred_fallthru
      _
    // Predicated region
    $region22: #{contrastive_loss.1} parent=1 // pred_check
      _
    $region23: #{contrastive_loss.1} parent=1 // pred_check_branch
      %97 = sbr.rel (0) target = $region25
    $region24: #{contrastive_loss.1} parent=1 // pred_region
      %98 = dma.done [#allocation4], 16
    $region25: #{contrastive_loss.1} parent=1 // pred_fallthru
      _
    %99 = vsyncpa [#allocation3], 1
    %100 = vsyncpa [#allocation4], 1

</llo_original>
